<compile_context>
chip_gen: v5e
topology: v5e:2x2
jax: 0.10.0
libtpu: 0.0.40
codegen_flags: <defaults>
</compile_context>

<pallas_src>
import jax
import jax.numpy as jnp
from jax.experimental import pallas as pl
from jax.experimental.pallas import tpu as pltpu


def channel_attention_kernel(x_ref, w1_ref, w2_ref, o_ref):
    # x_ref : (C, TP)    channel-major slab, pixels on the lane axis
    # w1_ref: (Cmid, C)  fc1 weight (PyTorch 1x1-conv weight, squeezed)
    # w2_ref: (C, Cmid)  fc2 weight
    xf = x_ref[...].astype(jnp.float32)
    w1 = w1_ref[...].astype(jnp.float32)
    w2 = w2_ref[...].astype(jnp.float32)

    # fc1 + ReLU: contraction over C on the MXU, pixel dim stays on the N axis.
    h = jnp.dot(w1, xf, preferred_element_type=jnp.float32)      # (Cmid, TP)
    h = jnp.maximum(h, 0.0)

    # fc2: contraction over Cmid (tiny, C // reduction_ratio) -> unrolled VPU
    # broadcast MACs; fall back to the MXU if it is ever wide.
    cmid = w2.shape[1]
    if cmid <= 8:
        s = w2[:, 0:1] * h[0:1, :]
        for m in range(1, cmid):
            s = s + w2[:, m:m + 1] * h[m:m + 1, :]               # (C, TP)
    else:
        s = jnp.dot(w2, h, preferred_element_type=jnp.float32)

    s = jax.nn.sigmoid(s)                                         # per-pixel gate (EUP)
    o_ref[...] = (s * xf).astype(o_ref.dtype)


def _choose_pixel_tile(hw, c, itemsize, target_bytes=2 << 20):
    """Largest 128-multiple dividing hw with one (C, TP) block ~<= target_bytes.

    Falls back to the full spatial extent when hw is not 128-aligned (a block
    dim equal to the full array dim satisfies the (8,128) rule).
    """
    if hw % 128 != 0:
        return hw
    cap = max(128, (target_bytes // max(1, c * itemsize)) // 128 * 128)
    tp = min(hw, cap)
    while hw % tp != 0:
        tp -= 128
    return tp


def channel_attention(x_nchw, w1, w2):
    """x_nchw: (B, C, H, W); w1: (Cmid, C, 1, 1); w2: (C, Cmid, 1, 1) (PyTorch layouts)."""
    B, C, H, W = x_nchw.shape
    Cmid = w1.shape[0]
    HW = H * W

    x_flat = x_nchw.reshape(B, C, HW)        # contiguous reshape, no transpose
    w1_2d = w1[:, :, 0, 0]                   # (Cmid, C)
    w2_2d = w2[:, :, 0, 0]                   # (C, Cmid)

    tp = _choose_pixel_tile(HW, C, jnp.dtype(x_nchw.dtype).itemsize)
    grid = (B, HW // tp)

    out_flat = pl.pallas_call(
        channel_attention_kernel,
        out_shape=jax.ShapeDtypeStruct((B, C, HW), x_nchw.dtype),
        grid_spec=pltpu.PrefetchScalarGridSpec(
            num_scalar_prefetch=0,
            grid=grid,
            in_specs=[
                # Batch dim squeezed out; kernel sees a lane-dense (C, TP) slab.
                pl.BlockSpec((None, C, tp), lambda b, p: (b, 0, p)),
                pl.BlockSpec((Cmid, C), lambda b, p: (0, 0)),
                pl.BlockSpec((C, Cmid), lambda b, p: (0, 0)),
            ],
            out_specs=pl.BlockSpec((None, C, tp), lambda b, p: (b, 0, p)),
        ),
        compiler_params=pltpu.CompilerParams(
            dimension_semantics=("parallel", "parallel"),
            # ~<= 10 MiB actually used (2 MiB blocks, double-buffered in+out);
            # 32 MiB is safe on all of v5e/v6e (128 MiB) and v7x (64 MiB).
            vmem_limit_bytes=32 * 1024 * 1024,
        ),
    )(x_flat, w1_2d, w2_2d)

    return out_flat.reshape(B, C, H, W)


if __name__ == "__main__":
    B, C, H, W = 2, 32, 16, 16
    reduction_ratio = 16
    Cmid = C // reduction_ratio  # = 2

    key = jax.random.PRNGKey(0)
    kx, k1, k2 = jax.random.split(key, 3)

    x = jax.random.normal(kx, (B, C, H, W), dtype=jnp.float32)
    # Deterministic synthetic weights in PyTorch Conv2d layout (out, in, 1, 1).
    w1 = 0.1 * jax.random.normal(k1, (Cmid, C, 1, 1), dtype=jnp.float32)
    w2 = 0.1 * jax.random.normal(k2, (C, Cmid, 1, 1), dtype=jnp.float32)

    out = channel_attention(x, w1, w2)
    out = jax.block_until_ready(out)

    # Pure-JAX reference (the PyTorch module applies the 1x1-conv MLP per pixel — no pooling).
    h_ref = jnp.maximum(jnp.einsum("bchw,mc->bmhw", x, w1[:, :, 0, 0]), 0.0)
    s_ref = jax.nn.sigmoid(jnp.einsum("bmhw,cm->bchw", h_ref, w2[:, :, 0, 0]))
    ref = s_ref * x
    assert jnp.allclose(out, ref, atol=1e-5, rtol=1e-5), "mismatch vs reference"

    print("KERNEL_OK")
</pallas_src>

<mosaic_0001>
module attributes {stable_mosaic.version = 11 : i64} {
  func.func @channel_attention_kernel(%arg0: i32, %arg1: i32, %arg2: memref<1x32x256xf32, #tpu.memory_space<vmem>>, %arg3: memref<2x32xf32, #tpu.memory_space<vmem>>, %arg4: memref<32x2xf32, #tpu.memory_space<vmem>>, %arg5: memref<1x32x256xf32, #tpu.memory_space<vmem>>) attributes {dimension_semantics = [#tpu.dimension_semantics<parallel>, #tpu.dimension_semantics<parallel>], iteration_bounds = array<i64: 2, 1>, scalar_prefetch = 0 : i64, scratch_operands = 0 : i64, tpu.core_type = #tpu.core_type<tc>, window_params = [{transform_indices = @transform_0, window_bounds = array<i64: 1, 32, 256>}, {pipeline_mode = #tpu.pipeline_mode<synchronous>, transform_indices = @transform_1, window_bounds = array<i64: 2, 32>}, {pipeline_mode = #tpu.pipeline_mode<synchronous>, transform_indices = @transform_2, window_bounds = array<i64: 32, 2>}, {transform_indices = @transform_3, window_bounds = array<i64: 1, 32, 256>}]} {
    %c0 = arith.constant 0 : index
    %c0_0 = arith.constant 0 : index
    %c0_1 = arith.constant 0 : index
    %0 = vector.load %arg2[%c0, %c0_0, %c0_1] : memref<1x32x256xf32, #tpu.memory_space<vmem>>, vector<1x32x256xf32>
    %1 = vector.shape_cast %0 : vector<1x32x256xf32> to vector<32x256xf32>
    %c0_2 = arith.constant 0 : index
    %c0_3 = arith.constant 0 : index
    %2 = vector.load %arg3[%c0_2, %c0_3] : memref<2x32xf32, #tpu.memory_space<vmem>>, vector<2x32xf32>
    %c0_4 = arith.constant 0 : index
    %c0_5 = arith.constant 0 : index
    %3 = vector.load %arg4[%c0_4, %c0_5] : memref<32x2xf32, #tpu.memory_space<vmem>>, vector<32x2xf32>
    %cst = arith.constant dense<0.000000e+00> : vector<2x256xf32>
    %4 = tpu.matmul %2, %1, %cst {dimension_numbers = #tpu.dot_dimension_numbers<[1], [0], [0], [1], [0, 0, 1, 1], [], []>} : vector<2x32xf32>, vector<32x256xf32>, vector<2x256xf32> -> vector<2x256xf32>
    %cst_6 = arith.constant 0.000000e+00 : f32
    %5 = vector.broadcast %cst_6 : f32 to vector<2x256xf32>
    %6 = arith.maximumf %4, %5 : vector<2x256xf32>
    %7 = vector.extract_strided_slice %3 {offsets = [0, 0], sizes = [32, 1], strides = [1, 1]} : vector<32x2xf32> to vector<32x1xf32>
    %8 = vector.extract_strided_slice %6 {offsets = [0, 0], sizes = [1, 256], strides = [1, 1]} : vector<2x256xf32> to vector<1x256xf32>
    %9 = vector.broadcast %7 : vector<32x1xf32> to vector<32x256xf32>
    %10 = vector.broadcast %8 : vector<1x256xf32> to vector<32x256xf32>
    %11 = arith.mulf %9, %10 : vector<32x256xf32>
    %12 = vector.extract_strided_slice %3 {offsets = [0, 1], sizes = [32, 1], strides = [1, 1]} : vector<32x2xf32> to vector<32x1xf32>
    %13 = vector.extract_strided_slice %6 {offsets = [1, 0], sizes = [1, 256], strides = [1, 1]} : vector<2x256xf32> to vector<1x256xf32>
    %14 = vector.broadcast %12 : vector<32x1xf32> to vector<32x256xf32>
    %15 = vector.broadcast %13 : vector<1x256xf32> to vector<32x256xf32>
    %16 = arith.mulf %14, %15 : vector<32x256xf32>
    %17 = arith.addf %11, %16 : vector<32x256xf32>
    %18 = arith.negf %17 : vector<32x256xf32>
    %19 = math.exp %18 : vector<32x256xf32>
    %cst_7 = arith.constant 1.000000e+00 : f32
    %20 = vector.broadcast %cst_7 : f32 to vector<32x256xf32>
    %21 = arith.addf %20, %19 : vector<32x256xf32>
    %22 = arith.divf %20, %21 : vector<32x256xf32>
    %23 = arith.mulf %22, %1 : vector<32x256xf32>
    %c0_8 = arith.constant 0 : index
    %c0_9 = arith.constant 0 : index
    %c0_10 = arith.constant 0 : index
    %24 = vector.load %arg5[%c0_8, %c0_9, %c0_10] : memref<1x32x256xf32, #tpu.memory_space<vmem>>, vector<1x32x256xf32>
    %25 = vector.shape_cast %24 : vector<1x32x256xf32> to vector<32x256xf32>
    %26 = vector.shape_cast %23 : vector<32x256xf32> to vector<1x32x256xf32>
    tpu.vector_store %arg5[%c0_8, %c0_9, %c0_10], %26 {strides = array<i32>} : memref<1x32x256xf32, #tpu.memory_space<vmem>>, vector<1x32x256xf32>,
    return
  }
  func.func @transform_0(%arg0: i32, %arg1: i32) -> (i32, i32, i32) {
    %c0_i32 = arith.constant 0 : i32
    %c0_i32_0 = arith.constant 0 : i32
    return %arg0, %c0_i32, %arg1 : i32, i32, i32
  }
  func.func @transform_1(%arg0: i32, %arg1: i32) -> (i32, i32) {
    %c0_i32 = arith.constant 0 : i32
    %c0_i32_0 = arith.constant 0 : i32
    %c0_i32_1 = arith.constant 0 : i32
    return %c0_i32, %c0_i32_0 : i32, i32
  }
  func.func @transform_2(%arg0: i32, %arg1: i32) -> (i32, i32) {
    %c0_i32 = arith.constant 0 : i32
    %c0_i32_0 = arith.constant 0 : i32
    %c0_i32_1 = arith.constant 0 : i32
    return %c0_i32, %c0_i32_0 : i32, i32
  }
  func.func @transform_3(%arg0: i32, %arg1: i32) -> (i32, i32, i32) {
    %c0_i32 = arith.constant 0 : i32
    %c0_i32_0 = arith.constant 0 : i32
    return %arg0, %c0_i32, %arg1 : i32, i32, i32
  }
}

</mosaic_0001>

<llo_original>
// kernel: tpu_custom_call.1
$region0: #{tpu_custom_call.1}
  #allocation0 [shape = 'u32[]', space=smem, size = 0x4, offset = 0x4, fixed_abs, tag = 'smem constant byte address 0x4 - core index']
  #allocation1 [shape = 'u32[72,128]{1,0:T(1,128)}', space=vmem, size = 0x9000, scoped, tag = 'internal scratch']
  %s0 = inlined_call_operand.hbm [shape: f32[2,32,256], index: 0, kind: input, shape index: {}]
  %s1 = inlined_call_operand.vmem [shape: f32[2,32], index: 1, kind: input, shape index: {}]
  %s2 = inlined_call_operand.vmem [shape: f32[32,2], index: 2, kind: input, shape index: {}]
  %s3 = inlined_call_operand.hbm [shape: f32[2,32,256], index: 3, kind: output, shape index: {}]
  %s4 = sld [smem:[#allocation0]]
  $region49: #{tpu_custom_call.1} parent=0
    _
  %s6 = ssub.s32 1, %s4
  %s7 = scalar_select 0, %s6, %s4
  $region1: #{tpu_custom_call.1} parent=0
    #allocation2 [shape = 'u8[65536]{0}', space=vmem, size = 0x10000, scoped, tag = 'input window, operand 0']
    #allocation3 [shape = 's32[2]{0}', space=sflag, size = 0x8, scoped, tag = 'scoped memory for tpu_custom_call.1']
    #allocation4 [shape = 's32[2]{0}', space=sflag, size = 0x8, scoped, tag = 'scoped memory for tpu_custom_call.1']
    #allocation5 [shape = 'u8[65536]{0}', space=vmem, size = 0x10000, scoped, tag = 'output window, operand 0']
    %8 = vsyncpa [#allocation3], 0
    %s9 = scalar_lea.sflag [#allocation3], 1
    %10 = vsyncpa %s9, 0
    %11 = vsyncpa [#allocation4], 0
    %s12 = scalar_lea.sflag [#allocation4], 1
    %13 = vsyncpa %s12, 0
    loop: start=0, step=1, limit=4
    $region2: #{tpu_custom_call.1} parent=1 // loop_pre_header
      _
    $region3: #{tpu_custom_call.1} parent=1 // loop_header
      %s15 = sphi 0, %s19
      %p16 = scmp.ge.s32.totalorder %s15, 4
      %s22 = sphi 0, %s34
      %s23 = sphi 0, %s30
      %s24 = sphi 0, %s22
      %s25 = sphi 0, %s23
      %s26 = sphi 0, %s24
      %s27 = sphi 0, %s25
      %s39 = sphi 0, %s41
      %s42 = sphi 0, %s39
      %s43 = sphi 0, %s42
      %s59 = sphi 0, %s43
      %s63 = sphi 0, %s63
      %s65 = sphi 0, %s63
      %s66 = sphi 0, %s65
      %s80 = sphi 0, %s66
      %s84 = sphi 0, %s84
      %s86 = sphi 0, %s84
      %s87 = sphi 0, %s86
      %s101 = sphi 0, %s87
      %s109 = sphi 0, %s111
      %s112 = sphi 0, %s109
      %s113 = sphi 0, %s112
      %s129 = sphi 0, %s113
    $region4: #{tpu_custom_call.1} parent=1 // loop_header_branch
      %18 = sbr.rel (%p16) target = $region8
    $region5: #{tpu_custom_call.1} parent=1 // loop_body
      %s20 = ssub.s32 %s15, 1
      %s21 = ssub.s32 %s15, 2
      %s28 = sadd.s32 1, %s23
      %p29 = scmp.ge.s32.totalorder %s28, 1
      %s30 = scalar_select %p29, 0, %s28
      %s31 = sadd.s32 1, %s22
      %s32 = scalar_select %p29, %s31, %s22
      %p33 = scmp.ge.s32.totalorder %s32, 2
      %s34 = scalar_select %p33, 0, %s32
      %s35 = ssub.s32 %s22, %s34
      %s36 = ssub.s32 %s23, %s30
      %s37 = sor.u32 %s35, %s36
      %p38 = scmp.eq.s32.totalorder %s37, 0
      %s40 = sadd.s32 %s39, 1
      %s41 = scalar_select %p38, %s39, %s40
      %p44 = pneg %p38
      %p45 = scmp.eq.s32.totalorder %s15, 1
      %p46 = por %p44, %p45
      %p47 = scmp.ne.s32.totalorder %s39, %s42
      %p48 = scmp.eq.s32.totalorder %s15, 0
      %p49 = por %p47, %p48
      %p50 = scmp.ne.s32.totalorder %s39, %s42
      %p51 = scmp.eq.s32.totalorder %s20, 1
      %p52 = por %p50, %p51
      %p53 = scmp.ne.s32.totalorder %s42, %s43
      %p54 = scmp.eq.s32.totalorder %s20, 0
      %p55 = por %p53, %p54
      %p56 = scmp.ne.s32.totalorder %s42, %s43
      %p57 = scmp.eq.s32.totalorder %s21, 1
      %p58 = por %p56, %p57
      %p60 = scmp.ne.s32.totalorder %s43, %s59
      %p61 = scmp.eq.s32.totalorder %s21, 0
      %p62 = por %p60, %p61
      %s64 = sadd.s32 %s63, 1
      %p67 = scmp.eq.s32.totalorder %s15, 1
      %p68 = scmp.ne.s32.totalorder %s63, %s65
      %p69 = scmp.eq.s32.totalorder %s15, 0
      %p70 = por %p68, %p69
      %p71 = scmp.ne.s32.totalorder %s63, %s65
      %p72 = scmp.eq.s32.totalorder %s20, 1
      %p73 = por %p71, %p72
      %p74 = scmp.ne.s32.totalorder %s65, %s66
      %p75 = scmp.eq.s32.totalorder %s20, 0
      %p76 = por %p74, %p75
      %p77 = scmp.ne.s32.totalorder %s65, %s66
      %p78 = scmp.eq.s32.totalorder %s21, 1
      %p79 = por %p77, %p78
      %p81 = scmp.ne.s32.totalorder %s66, %s80
      %p82 = scmp.eq.s32.totalorder %s21, 0
      %p83 = por %p81, %p82
      %s85 = sadd.s32 %s84, 1
      %p88 = scmp.eq.s32.totalorder %s15, 1
      %p89 = scmp.ne.s32.totalorder %s84, %s86
      %p90 = scmp.eq.s32.totalorder %s15, 0
      %p91 = por %p89, %p90
      %p92 = scmp.ne.s32.totalorder %s84, %s86
      %p93 = scmp.eq.s32.totalorder %s20, 1
      %p94 = por %p92, %p93
      %p95 = scmp.ne.s32.totalorder %s86, %s87
      %p96 = scmp.eq.s32.totalorder %s20, 0
      %p97 = por %p95, %p96
      %p98 = scmp.ne.s32.totalorder %s86, %s87
      %p99 = scmp.eq.s32.totalorder %s21, 1
      %p100 = por %p98, %p99
      %p102 = scmp.ne.s32.totalorder %s87, %s101
      %p103 = scmp.eq.s32.totalorder %s21, 0
      %p104 = por %p102, %p103
      %s105 = ssub.s32 %s22, %s34
      %s106 = ssub.s32 %s23, %s30
      %s107 = sor.u32 %s105, %s106
      %p108 = scmp.eq.s32.totalorder %s107, 0
      %s110 = sadd.s32 %s109, 1
      %s111 = scalar_select %p108, %s109, %s110
      %p114 = pneg %p108
      %p115 = scmp.eq.s32.totalorder %s15, 1
      %p116 = por %p114, %p115
      %p117 = scmp.ne.s32.totalorder %s109, %s112
      %p118 = scmp.eq.s32.totalorder %s15, 0
      %p119 = por %p117, %p118
      %p120 = scmp.ne.s32.totalorder %s109, %s112
      %p121 = scmp.eq.s32.totalorder %s20, 1
      %p122 = por %p120, %p121
      %p123 = scmp.ne.s32.totalorder %s112, %s113
      %p124 = scmp.eq.s32.totalorder %s20, 0
      %p125 = por %p123, %p124
      %p126 = scmp.ne.s32.totalorder %s112, %s113
      %p127 = scmp.eq.s32.totalorder %s21, 1
      %p128 = por %p126, %p127
      %p130 = scmp.ne.s32.totalorder %s113, %s129
      %p131 = scmp.eq.s32.totalorder %s21, 0
      %p132 = por %p130, %p131
      %p133 = scmp.le.s32.totalorder 1, %s15
      %p134 = scmp.lt.s32.totalorder %s15, 3
      %p135 = pnand %p133, %p134
      %p136 = pneg %p135
      // Predicated region
      $region9: #{tpu_custom_call.1} parent=5 // pred_check
        _
      $region10: #{tpu_custom_call.1} parent=5 // pred_check_branch
        %138 = sbr.rel (%p135) target = $region12
      $region11: #{tpu_custom_call.1} parent=5 // pred_region
        %s139 = ssub.s32 %s15, 1
        // Predicated region
        $region13: #{tpu_custom_call.1} parent=11 // pred_check
          %p140 = pneg %p76
        $region14: #{tpu_custom_call.1} parent=11 // pred_check_branch
          %142 = sbr.rel (%p140) target = $region16
        $region15: #{tpu_custom_call.1} parent=11 // pred_region
          _
        $region16: #{tpu_custom_call.1} parent=11 // pred_fallthru
          _
        // Predicated region
        $region17: #{tpu_custom_call.1} parent=11 // pred_check
          %p143 = pneg %p97
        $region18: #{tpu_custom_call.1} parent=11 // pred_check_branch
          %145 = sbr.rel (%p143) target = $region20
        $region19: #{tpu_custom_call.1} parent=11 // pred_region
          _
        $region20: #{tpu_custom_call.1} parent=11 // pred_fallthru
          _
      $region12: #{tpu_custom_call.1} parent=5 // pred_fallthru
        _
      %p146 = scmp.lt.s32.totalorder %s15, 2
      // Predicated region
      $region21: #{tpu_custom_call.1} parent=5 // pred_check
        %p147 = pneg %p146
      $region22: #{tpu_custom_call.1} parent=5 // pred_check_branch
        %149 = sbr.rel (%p147) target = $region24
      $region23: #{tpu_custom_call.1} parent=5 // pred_region
        // Predicated region
        $region25: #{tpu_custom_call.1} parent=23 // pred_check
          %p150 = pneg %p49
        $region26: #{tpu_custom_call.1} parent=23 // pred_check_branch
          %152 = sbr.rel (%p150) target = $region28
        $region27: #{tpu_custom_call.1} parent=23 // pred_region
          %s153 = sand.u32 %s39, 1
          %s154 = scalar_lea.sflag [#allocation3], %s153
          %s155 = sand.u32 %s39, 1
          %s156 = smul.addr %s155, 64
          %s157 = scalar_lea.vmem [#allocation2], %s156
          %s158 = smul.u32 2, %s23
          %160 = vsyncadd %s154, 0
          %s161 = smul.addr %s22, 8
          %s162 = sadd.s32 %s158, %s161
          %s163 = smul.addr %s162, 8
          %s164 = scalar_lea.hbm %s0, %s163
          %s165 = sshll.u32 %s164, 4
          %s166 = int_to_ptr.hbm [resolvable:$true] %s165
          %s167 = sshll.u32 %s157, 4
          %s168 = int_to_ptr.vmem [resolvable:$true] %s167
          %173 = dma.hbm_to_vmem [thread:$0]  %s166, 1024, %s168, %s154, 256, 256, 16
        $region28: #{tpu_custom_call.1} parent=23 // pred_fallthru
          _
      $region24: #{tpu_custom_call.1} parent=5 // pred_fallthru
        _
      %p174 = scmp.le.s32.totalorder 1, %s15
      %p175 = scmp.lt.s32.totalorder %s15, 3
      %p176 = pnand %p174, %p175
      %p177 = pneg %p176
      // Predicated region
      $region29: #{tpu_custom_call.1} parent=5 // pred_check
        _
      $region30: #{tpu_custom_call.1} parent=5 // pred_check_branch
        %179 = sbr.rel (%p176) target = $region32
      $region31: #{tpu_custom_call.1} parent=5 // pred_region
        %s180 = ssub.s32 %s15, 1
        %s181 = sand.u32 %s42, 1
        %s182 = scalar_lea.sflag [#allocation3], %s181
        %s183 = sand.u32 %s42, 1
        %s184 = smul.addr %s183, 64
        %s185 = scalar_lea.vmem [#allocation2], %s184
        // Predicated region
        $region33: #{tpu_custom_call.1} parent=31 // pred_check
          %p186 = pneg %p55
        $region34: #{tpu_custom_call.1} parent=31 // pred_check_branch
          %188 = sbr.rel (%p186) target = $region36
        $region35: #{tpu_custom_call.1} parent=31 // pred_region
          %190 = dma.done %s182, 1024
        $region36: #{tpu_custom_call.1} parent=31 // pred_fallthru
          _
        %s191 = sand.u32 %s42, 1
        %s192 = scalar_lea.sflag [#allocation3], %s191
        %s193 = sand.u32 %s42, 1
        %s194 = smul.addr %s193, 64
        %s195 = scalar_lea.vmem [#allocation2], %s194
        %p196 = pneg %p55
        %p197 = pneg %p52
        %p198 = pneg %p76
        %p199 = pneg %p73
        %p200 = pneg %p97
        %p201 = pneg %p94
        %p202 = pneg %p125
        %p203 = pneg %p122
        %s204 = sand.u32 %s112, 1
        %s205 = scalar_lea.sflag [#allocation4], %s204
        %s206 = sand.u32 %s112, 1
        %s207 = smul.addr %s206, 64
        %s208 = scalar_lea.vmem [#allocation5], %s207
        %s209 = smul.u32 2, %s25
        %s210 = smul.u32 2, %s25
        %v211 = vld [vmem:[%s185] sm:$0xff]
        %v212 = vld [vmem:[%s185 + $0x8] sm:$0xff]
        %v213 = vld [vmem:[%s185 + $0x10] sm:$0xff]
        %v214 = vld [vmem:[%s185 + $0x18] sm:$0xff]
        %v215 = vld [vmem:[%s185 + $0x20] sm:$0xff]
        %v216 = vld [vmem:[%s185 + $0x28] sm:$0xff]
        %v217 = vld [vmem:[%s185 + $0x30] sm:$0xff]
        %v218 = vld [vmem:[%s185 + $0x38] sm:$0xff]
        %v219 = vld [vmem:[%s1] sm:$0x3]
        %v220 = vld [vmem:[%s2] sm:$0xff]
        %v221 = vld [vmem:[%s2 + $0x8] sm:$0xff]
        %v222 = vld [vmem:[%s2 + $0x10] sm:$0xff]
        %v223 = vld [vmem:[%s2 + $0x18] sm:$0xff]
        %vm224 = vcmask 261120
        %v226 = vsel %vm224, %v219, 0
        %228 = vmatpush.msra.mxu0 0.0
        %229 = vmatpush.msra.mxu0 0.0
        %230 = vmatpush.msra.mxu0 0.0
        %231 = vmatpush.msra.mxu0 0.0
        %232 = vmatpush.msra.mxu0 0.0
        %233 = vmatpush.msra.mxu0 0.0
        %234 = vmatpush.msra.mxu0 0.0
        %235 = vmatpush.msra.mxu0 0.0
        %236 = vmatpush.msra.mxu0 0.0
        %237 = vmatpush.msra.mxu0 0.0
        %238 = vmatpush.msra.mxu0 0.0
        %239 = vmatpush.msra.mxu0 0.0
        %240 = vmatpush.msra.mxu0 %v217
        %241 = vmatpush.msra.mxu0 %v215
        %242 = vmatpush.msra.mxu0 %v213
        %243 = vmatpush.msra.mxu0 %v211
        %244 = vmatmul.f32.gmra.mxu0 %v226
        %v245 = vpop.f32.mrf.mxu0
        %v246 = vadd.f32 0.0, %v245
        %247 = vdwg.mxu0
        %248 = vmatpush.msra.mxu0 0.0
        %249 = vmatpush.msra.mxu0 0.0
        %250 = vmatpush.msra.mxu0 0.0
        %251 = vmatpush.msra.mxu0 0.0
        %252 = vmatpush.msra.mxu0 0.0
        %253 = vmatpush.msra.mxu0 0.0
        %254 = vmatpush.msra.mxu0 0.0
        %255 = vmatpush.msra.mxu0 0.0
        %256 = vmatpush.msra.mxu0 0.0
        %257 = vmatpush.msra.mxu0 0.0
        %258 = vmatpush.msra.mxu0 0.0
        %259 = vmatpush.msra.mxu0 0.0
        %260 = vmatpush.msra.mxu0 %v218
        %261 = vmatpush.msra.mxu0 %v216
        %262 = vmatpush.msra.mxu0 %v214
        %263 = vmatpush.msra.mxu0 %v212
        %264 = vmatmul.f32.gmra.mxu0 %v226
        %v265 = vpop.f32.mrf.mxu0
        %v266 = vadd.f32 0.0, %v265
        %267 = vdwg.mxu0
        %v268 = vmax.f32 %v246, 0.0
        %v269 = vmax.f32 %v266, 0.0
        %271 = vset.pattern.permute.xlu0 0
        %272 = vperm.xlu0 %271, %v220
        %v273 = vpop.permute.xlu0 %272
        %276 = vset.pattern.permute.xlu0 0
        %277 = vperm.xlu0 %276, %v221
        %v278 = vpop.permute.xlu0 %277
        %281 = vset.pattern.permute.xlu0 0
        %282 = vperm.xlu0 %281, %v222
        %v283 = vpop.permute.xlu0 %282
        %286 = vset.pattern.permute.xlu0 0
        %287 = vperm.xlu0 %286, %v223
        %v288 = vpop.permute.xlu0 %287
        %v290 = vperm.slane %v268, 0
        %v291 = vperm.slane %v269, 0
        %v292 = vmul.f32 %v273, %v290
        %v293 = vmul.f32 %v273, %v291
        %v294 = vmul.f32 %v278, %v290
        %v295 = vmul.f32 %v278, %v291
        %v296 = vmul.f32 %v283, %v290
        %v297 = vmul.f32 %v283, %v291
        %v298 = vmul.f32 %v288, %v290
        %v299 = vmul.f32 %v288, %v291
        %300 = vset.pattern.permute.xlu0 1
        %301 = vperm.xlu0 %300, %v220
        %v302 = vpop.permute.xlu0 %301
        %304 = vset.pattern.permute.xlu0 1
        %305 = vperm.xlu0 %304, %v221
        %v306 = vpop.permute.xlu0 %305
        %308 = vset.pattern.permute.xlu0 1
        %309 = vperm.xlu0 %308, %v222
        %v310 = vpop.permute.xlu0 %309
        %312 = vset.pattern.permute.xlu0 1
        %313 = vperm.xlu0 %312, %v223
        %v314 = vpop.permute.xlu0 %313
        %v316 = vperm.slane %v268, 1
        %v317 = vperm.slane %v269, 1
        %v318 = vmul.f32 %v302, %v316
        %v319 = vmul.f32 %v302, %v317
        %v320 = vmul.f32 %v306, %v316
        %v321 = vmul.f32 %v306, %v317
        %v322 = vmul.f32 %v310, %v316
        %v323 = vmul.f32 %v310, %v317
        %v324 = vmul.f32 %v314, %v316
        %v325 = vmul.f32 %v314, %v317
        %v326 = vadd.f32 %v292, %v318
        %v327 = vadd.f32 %v293, %v319
        %v328 = vadd.f32 %v294, %v320
        %v329 = vadd.f32 %v295, %v321
        %v330 = vadd.f32 %v296, %v322
        %v331 = vadd.f32 %v297, %v323
        %v332 = vadd.f32 %v298, %v324
        %v333 = vadd.f32 %v299, %v325
        %v334 = vxor.u32 %v326, 2147483648
        %v335 = vxor.u32 %v327, 2147483648
        %v336 = vxor.u32 %v328, 2147483648
        %v337 = vxor.u32 %v329, 2147483648
        %v338 = vxor.u32 %v330, 2147483648
        %v339 = vxor.u32 %v331, 2147483648
        %v340 = vxor.u32 %v332, 2147483648
        %v341 = vxor.u32 %v333, 2147483648
        %v342 = vmul.f32 %v334, 1.442695
        %v343 = vpow.pop %v342
        %v344 = vmul.f32 %v335, 1.442695
        %v345 = vpow.pop %v344
        %v346 = vmul.f32 %v336, 1.442695
        %v347 = vpow.pop %v346
        %v348 = vmul.f32 %v337, 1.442695
        %v349 = vpow.pop %v348
        %v350 = vmul.f32 %v338, 1.442695
        %v351 = vpow.pop %v350
        %v352 = vmul.f32 %v339, 1.442695
        %v353 = vpow.pop %v352
        %v354 = vmul.f32 %v340, 1.442695
        %v355 = vpow.pop %v354
        %v356 = vmul.f32 %v341, 1.442695
        %v357 = vpow.pop %v356
        %v358 = vadd.f32 %v343, 1.0
        %v359 = vadd.f32 %v345, 1.0
        %v360 = vadd.f32 %v347, 1.0
        %v361 = vadd.f32 %v349, 1.0
        %v362 = vadd.f32 %v351, 1.0
        %v363 = vadd.f32 %v353, 1.0
        %v364 = vadd.f32 %v355, 1.0
        %v365 = vadd.f32 %v357, 1.0
        %v366 = vrcp.pop %v358
        %v367 = vmul.f32 %v358, %v366
        %v368 = vsub.f32 1.0, %v367
        %v369 = vmul.f32 %v366, %v368
        %v370 = vadd.f32 %v366, %v369
        %vm371 = vweird.f32 %v358
        %vm372 = vweird.f32 %v366
        %vm373 = vmor %vm371, %vm372
        %v374 = vsel %vm373, %v366, %v370
        %v375 = vand.u32 2147483647, %v358
        %vm376 = vcmp.eq.f32.partialorder %v375, 8.507059e+37
        %v377 = vand.u32 %v358, 2147483648
        %v378 = vor.u32 1.1754944e-38, %v377
        %v379 = vsel %vm376, %v378, %v374
        %v380 = vmul.f32 1.0, %v379
        %v381 = vrcp.pop %v359
        %v382 = vmul.f32 %v359, %v381
        %v383 = vsub.f32 1.0, %v382
        %v384 = vmul.f32 %v381, %v383
        %v385 = vadd.f32 %v381, %v384
        %vm386 = vweird.f32 %v359
        %vm387 = vweird.f32 %v381
        %vm388 = vmor %vm386, %vm387
        %v389 = vsel %vm388, %v381, %v385
        %v390 = vand.u32 2147483647, %v359
        %vm391 = vcmp.eq.f32.partialorder %v390, 8.507059e+37
        %v392 = vand.u32 %v359, 2147483648
        %v393 = vor.u32 1.1754944e-38, %v392
        %v394 = vsel %vm391, %v393, %v389
        %v395 = vmul.f32 1.0, %v394
        %v396 = vrcp.pop %v360
        %v397 = vmul.f32 %v360, %v396
        %v398 = vsub.f32 1.0, %v397
        %v399 = vmul.f32 %v396, %v398
        %v400 = vadd.f32 %v396, %v399
        %vm401 = vweird.f32 %v360
        %vm402 = vweird.f32 %v396
        %vm403 = vmor %vm401, %vm402
        %v404 = vsel %vm403, %v396, %v400
        %v405 = vand.u32 2147483647, %v360
        %vm406 = vcmp.eq.f32.partialorder %v405, 8.507059e+37
        %v407 = vand.u32 %v360, 2147483648
        %v408 = vor.u32 1.1754944e-38, %v407
        %v409 = vsel %vm406, %v408, %v404
        %v410 = vmul.f32 1.0, %v409
        %v411 = vrcp.pop %v361
        %v412 = vmul.f32 %v361, %v411
        %v413 = vsub.f32 1.0, %v412
        %v414 = vmul.f32 %v411, %v413
        %v415 = vadd.f32 %v411, %v414
        %vm416 = vweird.f32 %v361
        %vm417 = vweird.f32 %v411
        %vm418 = vmor %vm416, %vm417
        %v419 = vsel %vm418, %v411, %v415
        %v420 = vand.u32 2147483647, %v361
        %vm421 = vcmp.eq.f32.partialorder %v420, 8.507059e+37
        %v422 = vand.u32 %v361, 2147483648
        %v423 = vor.u32 1.1754944e-38, %v422
        %v424 = vsel %vm421, %v423, %v419
        %v425 = vmul.f32 1.0, %v424
        %v426 = vrcp.pop %v362
        %v427 = vmul.f32 %v362, %v426
        %v428 = vsub.f32 1.0, %v427
        %v429 = vmul.f32 %v426, %v428
        %v430 = vadd.f32 %v426, %v429
        %vm431 = vweird.f32 %v362
        %vm432 = vweird.f32 %v426
        %vm433 = vmor %vm431, %vm432
        %v434 = vsel %vm433, %v426, %v430
        %v435 = vand.u32 2147483647, %v362
        %vm436 = vcmp.eq.f32.partialorder %v435, 8.507059e+37
        %v437 = vand.u32 %v362, 2147483648
        %v438 = vor.u32 1.1754944e-38, %v437
        %v439 = vsel %vm436, %v438, %v434
        %v440 = vmul.f32 1.0, %v439
        %v441 = vrcp.pop %v363
        %v442 = vmul.f32 %v363, %v441
        %v443 = vsub.f32 1.0, %v442
        %v444 = vmul.f32 %v441, %v443
        %v445 = vadd.f32 %v441, %v444
        %vm446 = vweird.f32 %v363
        %vm447 = vweird.f32 %v441
        %vm448 = vmor %vm446, %vm447
        %v449 = vsel %vm448, %v441, %v445
        %v450 = vand.u32 2147483647, %v363
        %vm451 = vcmp.eq.f32.partialorder %v450, 8.507059e+37
        %v452 = vand.u32 %v363, 2147483648
        %v453 = vor.u32 1.1754944e-38, %v452
        %v454 = vsel %vm451, %v453, %v449
        %v455 = vmul.f32 1.0, %v454
        %v456 = vrcp.pop %v364
        %v457 = vmul.f32 %v364, %v456
        %v458 = vsub.f32 1.0, %v457
        %v459 = vmul.f32 %v456, %v458
        %v460 = vadd.f32 %v456, %v459
        %vm461 = vweird.f32 %v364
        %vm462 = vweird.f32 %v456
        %vm463 = vmor %vm461, %vm462
        %v464 = vsel %vm463, %v456, %v460
        %v465 = vand.u32 2147483647, %v364
        %vm466 = vcmp.eq.f32.partialorder %v465, 8.507059e+37
        %v467 = vand.u32 %v364, 2147483648
        %v468 = vor.u32 1.1754944e-38, %v467
        %v469 = vsel %vm466, %v468, %v464
        %v470 = vmul.f32 1.0, %v469
        %v471 = vrcp.pop %v365
        %v472 = vmul.f32 %v365, %v471
        %v473 = vsub.f32 1.0, %v472
        %v474 = vmul.f32 %v471, %v473
        %v475 = vadd.f32 %v471, %v474
        %vm476 = vweird.f32 %v365
        %vm477 = vweird.f32 %v471
        %vm478 = vmor %vm476, %vm477
        %v479 = vsel %vm478, %v471, %v475
        %v480 = vand.u32 2147483647, %v365
        %vm481 = vcmp.eq.f32.partialorder %v480, 8.507059e+37
        %v482 = vand.u32 %v365, 2147483648
        %v483 = vor.u32 1.1754944e-38, %v482
        %v484 = vsel %vm481, %v483, %v479
        %v485 = vmul.f32 1.0, %v484
        %v486 = vmul.f32 %v380, %v211
        %v487 = vmul.f32 %v395, %v212
        %v488 = vmul.f32 %v410, %v213
        %v489 = vmul.f32 %v425, %v214
        %v490 = vmul.f32 %v440, %v215
        %v491 = vmul.f32 %v455, %v216
        %v492 = vmul.f32 %v470, %v217
        %v493 = vmul.f32 %v485, %v218
        %494 = vst [vmem:[%s208] sm:$0xff] %v486
        %495 = vst [vmem:[%s208 + $0x8] sm:$0xff] %v487
        %496 = vst [vmem:[%s208 + $0x10] sm:$0xff] %v488
        %497 = vst [vmem:[%s208 + $0x18] sm:$0xff] %v489
        %498 = vst [vmem:[%s208 + $0x20] sm:$0xff] %v490
        %499 = vst [vmem:[%s208 + $0x28] sm:$0xff] %v491
        %500 = vst [vmem:[%s208 + $0x30] sm:$0xff] %v492
        %501 = vst [vmem:[%s208 + $0x38] sm:$0xff] %v493
        %s502 = sand.u32 %s112, 1
        %s503 = scalar_lea.sflag [#allocation4], %s502
        %s504 = sand.u32 %s112, 1
        %s505 = smul.addr %s504, 64
        %s506 = scalar_lea.vmem [#allocation5], %s505
        // Predicated region
        $region37: #{tpu_custom_call.1} parent=31 // pred_check
          %p507 = pneg %p122
        $region38: #{tpu_custom_call.1} parent=31 // pred_check_branch
          %509 = sbr.rel (%p507) target = $region40
        $region39: #{tpu_custom_call.1} parent=31 // pred_region
          %s510 = smul.u32 2, %s25
          %512 = vsyncadd %s503, 0
          %s513 = smul.addr %s24, 8
          %s514 = sadd.s32 %s510, %s513
          %s515 = smul.addr %s514, 8
          %s516 = scalar_lea.hbm %s3, %s515
          %s517 = sshll.u32 %s506, 4
          %s518 = int_to_ptr.vmem [resolvable:$true] %s517
          %s519 = sshll.u32 %s516, 4
          %s520 = int_to_ptr.hbm [resolvable:$true] %s519
          %525 = dma.vmem_to_hbm [thread:$0]  %s518, 1024, %s520, %s503, 256, 256, 16
        $region40: #{tpu_custom_call.1} parent=31 // pred_fallthru
          _
      $region32: #{tpu_custom_call.1} parent=5 // pred_fallthru
        _
      %p526 = scmp.le.s32.totalorder 2, %s15
      // Predicated region
      $region41: #{tpu_custom_call.1} parent=5 // pred_check
        %p527 = pneg %p526
      $region42: #{tpu_custom_call.1} parent=5 // pred_check_branch
        %529 = sbr.rel (%p527) target = $region44
      $region43: #{tpu_custom_call.1} parent=5 // pred_region
        %s530 = ssub.s32 %s15, 2
        // Predicated region
        $region45: #{tpu_custom_call.1} parent=43 // pred_check
          %p531 = pneg %p128
        $region46: #{tpu_custom_call.1} parent=43 // pred_check_branch
          %533 = sbr.rel (%p531) target = $region48
        $region47: #{tpu_custom_call.1} parent=43 // pred_region
          %s534 = sand.u32 %s113, 1
          %s535 = scalar_lea.sflag [#allocation4], %s534
          %s536 = sand.u32 %s113, 1
          %s537 = smul.addr %s536, 64
          %s538 = scalar_lea.vmem [#allocation5], %s537
          %540 = dma.done %s535, 1024
        $region48: #{tpu_custom_call.1} parent=43 // pred_fallthru
          _
      $region44: #{tpu_custom_call.1} parent=5 // pred_fallthru
        _
    $region6: #{tpu_custom_call.1} parent=1 // loop_footer
      %s19 = sadd.s32 1, %s15
    $region7: #{tpu_custom_call.1} parent=1 // loop_footer_branch
      %14 = sbr.rel target = $region3
    $region8: #{tpu_custom_call.1} parent=1 // loop_exit
      _
    %541 = vsyncpa [#allocation3], 1
    %s542 = scalar_lea.sflag [#allocation3], 1
    %543 = vsyncpa %s542, 1
    %544 = vsyncpa [#allocation4], 1
    %s545 = scalar_lea.sflag [#allocation4], 1
    %546 = vsyncpa %s545, 1

</llo_original>
